<compile_context>
chip_gen: v6e
topology: v6e:2x2x1
jax: 0.10.0
libtpu: 0.0.40
codegen_flags: <defaults>
</compile_context>

<pallas_src>
from functools import partial
from typing import Optional, Sequence

import numpy as np
import jax
import jax.numpy as jnp
from jax.experimental import pallas as pl
from jax.experimental.pallas import tpu as pltpu


def _round_up(x: int, m: int) -> int:
    return (x + m - 1) // m * m


# ---------------------------------------------------------------------------
# Weight expansion: fold each Monarch factor (a grouped bmm) *and* the
# permutation that follows it into one dense (cur_in, cur_out) matrix so that
#   x @ D_0 @ D_1 @ ... @ D_{k-1}
# reproduces MonarchLinear.forward exactly (feature orderings included).
# In a real model this is a parameter-side transform done once per update.
# ---------------------------------------------------------------------------
def expand_monarch_factors(weights, in_dims, out_dims):
    k = len(in_dims)
    assert k == len(out_dims) and k > 1
    # Feature-axis ordering of the activation right before factor 0, i.e. what
    # `.view(-1, *in_dims).permute(roll(k+1, -2))` produces (batch axis dropped).
    state = list(in_dims[1:]) + [in_dims[0]]
    mats = []
    for i in range(k):
        w = weights[i]                          # (G, in_dim, out_dim)
        G, ind, outd = w.shape
        assert int(np.prod(state[:-1])) == G and state[-1] == ind
        cur_in, cur_out = G * ind, G * outd
        eye_g = jnp.eye(G, dtype=w.dtype)
        # Block-diagonal (group-major) matrix of the grouped bmm:
        #   D[(g, f), (h, o)] = w[g, f, o] * delta(g, h)
        D = (w[:, :, None, :] * eye_g[:, None, :, None]).reshape(cur_in, cur_out)
        dims_mid = state[:-1] + [outd]
        if i < k - 1:
            # Fold `tensor.swapaxes_(-1, i)` into a column permutation.
            D = D.reshape([cur_in] + dims_mid)
            D = jnp.swapaxes(D, 1 + i, 1 + (k - 1))
            D = D.reshape(cur_in, cur_out)
            new_state = list(dims_mid)
            new_state[i], new_state[-1] = new_state[-1], new_state[i]
        else:
            new_state = list(dims_mid)
        if i == 0:
            # Rows of D are ordered by `state`; the module's input features are
            # ordered (d0, d1, ..., d_{k-1}) -> fold the initial permute in too.
            D = D.reshape(list(state) + [cur_out])
            D = jnp.moveaxis(D, k - 1, 0)
            D = D.reshape(cur_in, cur_out)
        mats.append(D)
        state = new_state
    assert int(np.prod(state)) == int(np.prod(out_dims))
    return mats


# ---------------------------------------------------------------------------
# Fused kernel: per M-tile, chain all factor matmuls in VMEM + fused bias.
# ---------------------------------------------------------------------------
def _monarch_fused_kernel(*refs, num_factors: int, has_bias: bool):
    x_ref = refs[0]
    mat_refs = refs[1:1 + num_factors]
    b_ref = refs[1 + num_factors] if has_bias else None
    o_ref = refs[-1]

    t = x_ref[...].astype(jnp.float32)          # (M_tile, in_features)
    for m_ref in mat_refs:                      # one MXU matmul per factor;
        t = jnp.dot(t, m_ref[...].astype(jnp.float32),   # intermediates stay
                    preferred_element_type=jnp.float32)  # resident in VMEM
    if has_bias:
        t = t + b_ref[...].astype(jnp.float32)  # fused bias epilogue
    o_ref[...] = t.astype(o_ref.dtype)


def monarch_forward(x, weights, bias, in_dims, out_dims, *,
                    operand_dtype=None, interpret: bool = False):
    """Fused MonarchLinear forward (matches the PyTorch module's math)."""
    in_features = int(np.prod(in_dims))
    out_features = int(np.prod(out_dims))
    assert x.shape[-1] == in_features
    k = len(in_dims)
    has_bias = bias is not None

    mats = expand_monarch_factors(weights, in_dims, out_dims)

    x2 = x.reshape(-1, in_features)
    m = x2.shape[0]
    in_itemsize = jnp.dtype(x.dtype).itemsize
    out_itemsize = jnp.dtype(x.dtype).itemsize
    if operand_dtype is not None:               # e.g. jnp.bfloat16 on v6e/v7x
        x2 = x2.astype(operand_dtype)
        mats = [d.astype(operand_dtype) for d in mats]
        in_itemsize = jnp.dtype(operand_dtype).itemsize

    weight_bytes = sum(int(np.prod(d.shape)) * jnp.dtype(d.dtype).itemsize
                       for d in mats)
    if has_bias:
        weight_bytes += out_features * jnp.dtype(bias.dtype).itemsize
    max_feat = max([in_features] + [d.shape[1] for d in mats])

    # ---- M-tile selection against a cross-generation-safe VMEM budget ------
    vmem_budget = 28 * 1024 * 1024              # headroom even on v7x (64 MiB)
    m_tile = 8
    for cand in (1024, 512, 256, 128, 64, 32, 16, 8):
        need = (2 * cand * (in_features * in_itemsize + out_features * out_itemsize)
                + weight_bytes
                + 2 * cand * max_feat * 4)      # f32 intermediates in flight
        if need <= vmem_budget:
            m_tile = cand
            break
    m_tile = min(m_tile, _round_up(max(m, 1), 8))
    m_pad = _round_up(max(m, 1), m_tile)
    if m_pad != m:
        x2 = jnp.pad(x2, ((0, m_pad - m), (0, 0)))
    num_tiles = m_pad // m_tile

    need = (2 * m_tile * (in_features * in_itemsize + out_features * out_itemsize)
            + weight_bytes + 2 * m_tile * max_feat * 4)
    vmem_limit = int(min(max(2 * need, 16 * 1024 * 1024), 48 * 1024 * 1024))

    # ---- specs --------------------------------------------------------------
    inputs = [x2] + list(mats)
    in_specs = [pl.BlockSpec((m_tile, in_features), lambda i: (i, 0))]
    for d in mats:                               # whole factor matrix, resident
        in_specs.append(pl.BlockSpec(d.shape, lambda i: (0, 0)))
    if has_bias:
        inputs.append(bias.reshape(1, out_features))
        in_specs.append(pl.BlockSpec((1, out_features), lambda i: (0, 0)))
    out_specs = pl.BlockSpec((m_tile, out_features), lambda i: (i, 0))

    flops = 2 * m_pad * sum(d.shape[0] * d.shape[1] for d in mats)
    if has_bias:
        flops += m_pad * out_features
    bytes_accessed = (m_pad * in_features * in_itemsize
                      + m_pad * out_features * out_itemsize
                      + weight_bytes)

    out = pl.pallas_call(
        partial(_monarch_fused_kernel, num_factors=k, has_bias=has_bias),
        out_shape=jax.ShapeDtypeStruct((m_pad, out_features), x.dtype),
        grid=(num_tiles,),
        in_specs=in_specs,
        out_specs=out_specs,
        compiler_params=pltpu.CompilerParams(
            dimension_semantics=("parallel",),
            vmem_limit_bytes=vmem_limit),
        cost_estimate=pl.CostEstimate(flops=flops, transcendentals=0,
                                      bytes_accessed=bytes_accessed),
        interpret=interpret,
    )(*inputs)

    out = out[:m]
    return out.reshape(*x.shape[:-1], out_features)


# ---------------------------------------------------------------------------
# Parameter init (same as the PyTorch module) + pure-JAX reference forward.
# ---------------------------------------------------------------------------
def init_monarch_params(key, in_features, out_features, in_dims, out_dims,
                        bias=True, dtype=jnp.float32):
    assert len(in_dims) == len(out_dims) and len(in_dims) > 1
    assert int(np.prod(in_dims)) == in_features
    assert int(np.prod(out_dims)) == out_features

    init_std = (1.0 / np.sqrt(in_features)) ** (1.0 / len(in_dims))
    weights = []
    current_numel = int(np.prod(in_dims))
    keys = jax.random.split(key, len(in_dims) + 1)
    for i, (in_dim, out_dim) in enumerate(zip(in_dims, out_dims)):
        w = init_std * jax.random.normal(
            keys[i], (current_numel // in_dim, in_dim, out_dim), dtype=dtype)
        weights.append(w)
        current_numel = current_numel // in_dim * out_dim
    assert current_numel == out_features

    b = None
    if bias:
        bound = 1.0 / np.sqrt(in_features)
        b = jax.random.uniform(keys[-1], (out_features,), dtype=dtype,
                               minval=-bound, maxval=bound)
    return weights, b


def monarch_forward_reference(x, weights, bias, in_dims, out_dims):
    """Direct port of MonarchLinear.forward (pure JAX, for validation)."""
    input_shape = x.shape
    k = len(in_dims)
    t = x.reshape(-1, *in_dims)
    perm = tuple(int(p) for p in np.roll(np.arange(k + 1), -2))
    t = jnp.transpose(t, perm)
    for i in range(k):
        shp = t.shape
        flat = t.reshape(-1, shp[-2], shp[-1])
        out = jnp.matmul(flat, weights[i], precision=jax.lax.Precision.HIGHEST)
        t = out.reshape(*shp[:-1], -1)
        t = jnp.swapaxes(t, -1, i)
    t = t.reshape(-1, t.shape[-1])
    t = jnp.swapaxes(t, 0, 1)
    t = t.reshape(*input_shape[:-1], -1)
    if bias is not None:
        t = t + bias
    return t


if __name__ == "__main__":
    # Small config: in_features = 4*8 = 32, out_features = 8*4 = 32
    in_dims = (4, 8)
    out_dims = (8, 4)
    in_features = int(np.prod(in_dims))
    out_features = int(np.prod(out_dims))

    root = jax.random.PRNGKey(0)
    k_param, k_x = jax.random.split(root)

    weights, bias = init_monarch_params(
        k_param, in_features, out_features, in_dims, out_dims, bias=True)

    # input: (batch=2, seq=8, in_features=32)
    x = jax.random.normal(k_x, (2, 8, in_features), dtype=jnp.float32)

    fwd = jax.jit(partial(monarch_forward, in_dims=in_dims, out_dims=out_dims))
    y = jax.block_until_ready(fwd(x, weights, bias))

    y_ref = monarch_forward_reference(x, weights, bias, in_dims, out_dims)
    assert y.shape == (2, 8, out_features), y.shape
    np.testing.assert_allclose(np.asarray(y), np.asarray(y_ref),
                               rtol=1e-5, atol=1e-5)

    print("KERNEL_OK")
</pallas_src>

<mosaic_0001>
module attributes {stable_mosaic.version = 11 : i64} {
  func.func @_monarch_fused_kernel(%arg0: i32, %arg1: memref<16x32xf32, #tpu.memory_space<vmem>>, %arg2: memref<32x64xf32, #tpu.memory_space<vmem>>, %arg3: memref<64x32xf32, #tpu.memory_space<vmem>>, %arg4: memref<1x32xf32, #tpu.memory_space<vmem>>, %arg5: memref<16x32xf32, #tpu.memory_space<vmem>>) attributes {dimension_semantics = [#tpu.dimension_semantics<parallel>], iteration_bounds = array<i64: 1>, scalar_prefetch = 0 : i64, scratch_operands = 0 : i64, tpu.core_type = #tpu.core_type<tc>, window_params = [{transform_indices = @transform_0, window_bounds = array<i64: 16, 32>}, {pipeline_mode = #tpu.pipeline_mode<synchronous>, transform_indices = @transform_1, window_bounds = array<i64: 32, 64>}, {pipeline_mode = #tpu.pipeline_mode<synchronous>, transform_indices = @transform_2, window_bounds = array<i64: 64, 32>}, {pipeline_mode = #tpu.pipeline_mode<synchronous>, transform_indices = @transform_3, window_bounds = array<i64: 1, 32>}, {transform_indices = @transform_4, window_bounds = array<i64: 16, 32>}]} {
    %c0 = arith.constant 0 : index
    %c0_0 = arith.constant 0 : index
    %0 = vector.load %arg1[%c0, %c0_0] : memref<16x32xf32, #tpu.memory_space<vmem>>, vector<16x32xf32>
    %c0_1 = arith.constant 0 : index
    %c0_2 = arith.constant 0 : index
    %1 = vector.load %arg2[%c0_1, %c0_2] : memref<32x64xf32, #tpu.memory_space<vmem>>, vector<32x64xf32>
    %cst = arith.constant dense<0.000000e+00> : vector<16x64xf32>
    %2 = tpu.matmul %0, %1, %cst {dimension_numbers = #tpu.dot_dimension_numbers<[1], [0], [0], [1], [0, 0, 1, 1], [], []>} : vector<16x32xf32>, vector<32x64xf32>, vector<16x64xf32> -> vector<16x64xf32>
    %c0_3 = arith.constant 0 : index
    %c0_4 = arith.constant 0 : index
    %3 = vector.load %arg3[%c0_3, %c0_4] : memref<64x32xf32, #tpu.memory_space<vmem>>, vector<64x32xf32>
    %cst_5 = arith.constant dense<0.000000e+00> : vector<16x32xf32>
    %4 = tpu.matmul %2, %3, %cst_5 {dimension_numbers = #tpu.dot_dimension_numbers<[1], [0], [0], [1], [0, 0, 1, 1], [], []>} : vector<16x64xf32>, vector<64x32xf32>, vector<16x32xf32> -> vector<16x32xf32>
    %c0_6 = arith.constant 0 : index
    %c0_7 = arith.constant 0 : index
    %5 = vector.load %arg4[%c0_6, %c0_7] : memref<1x32xf32, #tpu.memory_space<vmem>>, vector<1x32xf32>
    %6 = vector.broadcast %5 : vector<1x32xf32> to vector<16x32xf32>
    %7 = arith.addf %4, %6 : vector<16x32xf32>
    %c0_8 = arith.constant 0 : index
    %c0_9 = arith.constant 0 : index
    %8 = vector.load %arg5[%c0_8, %c0_9] : memref<16x32xf32, #tpu.memory_space<vmem>>, vector<16x32xf32>
    tpu.vector_store %arg5[%c0_8, %c0_9], %7 {strides = array<i32>} : memref<16x32xf32, #tpu.memory_space<vmem>>, vector<16x32xf32>,
    return
  }
  func.func @transform_0(%arg0: i32) -> (i32, i32) {
    %c0_i32 = arith.constant 0 : i32
    %c0_i32_0 = arith.constant 0 : i32
    return %arg0, %c0_i32 : i32, i32
  }
  func.func @transform_1(%arg0: i32) -> (i32, i32) {
    %c0_i32 = arith.constant 0 : i32
    %c0_i32_0 = arith.constant 0 : i32
    %c0_i32_1 = arith.constant 0 : i32
    return %c0_i32, %c0_i32_0 : i32, i32
  }
  func.func @transform_2(%arg0: i32) -> (i32, i32) {
    %c0_i32 = arith.constant 0 : i32
    %c0_i32_0 = arith.constant 0 : i32
    %c0_i32_1 = arith.constant 0 : i32
    return %c0_i32, %c0_i32_0 : i32, i32
  }
  func.func @transform_3(%arg0: i32) -> (i32, i32) {
    %c0_i32 = arith.constant 0 : i32
    %c0_i32_0 = arith.constant 0 : i32
    %c0_i32_1 = arith.constant 0 : i32
    return %c0_i32, %c0_i32_0 : i32, i32
  }
  func.func @transform_4(%arg0: i32) -> (i32, i32) {
    %c0_i32 = arith.constant 0 : i32
    %c0_i32_0 = arith.constant 0 : i32
    return %arg0, %c0_i32 : i32, i32
  }
}

</mosaic_0001>

<llo_original>
// kernel: monarch_forward.1
$region0: #{monarch_forward.1}
  #allocation0 [shape = 'u32[]', space=smem, size = 0x4, offset = 0x4, fixed_abs, tag = 'smem constant byte address 0x4 - core index']
  #allocation1 [shape = 'u32[144,128]{1,0:T(1,128)}', space=vmem, size = 0x12000, scoped, tag = 'internal scratch']
  %s0 = inlined_call_operand.vmem [shape: f32[16,32], index: 0, kind: input, shape index: {}]
  %s1 = inlined_call_operand.vmem [shape: f32[32,64], index: 1, kind: input, shape index: {}]
  %s2 = inlined_call_operand.vmem [shape: f32[64,32], index: 2, kind: input, shape index: {}]
  %s3 = inlined_call_operand.vmem [shape: f32[1,32], index: 3, kind: input, shape index: {}]
  %s4 = inlined_call_operand.hbm [shape: f32[16,32], index: 4, kind: output, shape index: {}]
  %s5 = sld [smem:[#allocation0]]
  $region26: #{monarch_forward.1} parent=0
    _
  %s7 = ssub.s32 1, %s5
  %s8 = scalar_select 0, %s7, %s5
  $region1: #{monarch_forward.1} parent=0
    #allocation2 [shape = 'u8[8192]{0}', space=vmem, size = 0x2000, scoped, tag = 'output window, operand 0, single buffered']
    #allocation3 [shape = 's32[1]{0}', space=sflag, size = 0x4, scoped, tag = 'scoped memory for monarch_forward.1']
    %9 = vsyncpa [#allocation3], 0
    // Predicated region
    $region2: #{monarch_forward.1} parent=1 // pred_check
      _
    $region3: #{monarch_forward.1} parent=1 // pred_check_branch
      %11 = sbr.rel (0) target = $region5
    $region4: #{monarch_forward.1} parent=1 // pred_region
      _
    $region5: #{monarch_forward.1} parent=1 // pred_fallthru
      _
    // Predicated region
    $region6: #{monarch_forward.1} parent=1 // pred_check
      _
    $region7: #{monarch_forward.1} parent=1 // pred_check_branch
      %13 = sbr.rel (0) target = $region9
    $region8: #{monarch_forward.1} parent=1 // pred_region
      _
    $region9: #{monarch_forward.1} parent=1 // pred_fallthru
      _
    // Predicated region
    $region10: #{monarch_forward.1} parent=1 // pred_check
      _
    $region11: #{monarch_forward.1} parent=1 // pred_check_branch
      %15 = sbr.rel (0) target = $region13
    $region12: #{monarch_forward.1} parent=1 // pred_region
      _
    $region13: #{monarch_forward.1} parent=1 // pred_fallthru
      _
    // Predicated region
    $region14: #{monarch_forward.1} parent=1 // pred_check
      _
    $region15: #{monarch_forward.1} parent=1 // pred_check_branch
      %17 = sbr.rel (0) target = $region17
    $region16: #{monarch_forward.1} parent=1 // pred_region
      _
    $region17: #{monarch_forward.1} parent=1 // pred_fallthru
      _
    %v18 = vld [vmem:[%s0] sm:$0xff]
    %v19 = vld [vmem:[%s0 + $0x8] sm:$0xff]
    %v20 = vld [vmem:[%s1] sm:$0xff]
    %v21 = vld [vmem:[%s1 + $0x8] sm:$0xff]
    %v22 = vld [vmem:[%s1 + $0x10] sm:$0xff]
    %v23 = vld [vmem:[%s1 + $0x18] sm:$0xff]
    %vm24 = vcmask 261120
    %v26 = vsel %vm24, %v18, 0
    %v29 = vsel %vm24, %v19, 0
    %31 = vmatprep.subr.mxu0 0.0
    %32 = vmatpush1.msra.mxu0 0.0
    %33 = vmatprep.subr.mxu0 0.0
    %34 = vmatpush1.msra.mxu0 0.0
    %35 = vmatprep.subr.mxu0 0.0
    %36 = vmatpush1.msra.mxu0 0.0
    %37 = vmatprep.subr.mxu0 0.0
    %38 = vmatpush1.msra.mxu0 0.0
    %39 = vmatprep.subr.mxu0 0.0
    %40 = vmatpush1.msra.mxu0 0.0
    %41 = vmatprep.subr.mxu0 0.0
    %42 = vmatpush1.msra.mxu0 0.0
    %43 = vmatprep.subr.mxu0 0.0
    %44 = vmatpush1.msra.mxu0 0.0
    %45 = vmatprep.subr.mxu0 0.0
    %46 = vmatpush1.msra.mxu0 0.0
    %47 = vmatprep.subr.mxu0 0.0
    %48 = vmatpush1.msra.mxu0 0.0
    %49 = vmatprep.subr.mxu0 0.0
    %50 = vmatpush1.msra.mxu0 0.0
    %51 = vmatprep.subr.mxu0 0.0
    %52 = vmatpush1.msra.mxu0 0.0
    %53 = vmatprep.subr.mxu0 0.0
    %54 = vmatpush1.msra.mxu0 0.0
    %55 = vmatprep.subr.mxu0 0.0
    %56 = vmatpush1.msra.mxu0 %v23
    %57 = vmatprep.subr.mxu0 0.0
    %58 = vmatpush1.msra.mxu0 %v22
    %59 = vmatprep.subr.mxu0 0.0
    %60 = vmatpush1.msra.mxu0 %v21
    %61 = vmatprep.subr.mxu0 0.0
    %62 = vmatpush1.msra.mxu0 %v20
    %63 = vmatprep.subr.mxu0 0.0
    %64 = vmatpush2.msra.mxu0 0.0
    %65 = vmatprep.subr.mxu0 0.0
    %66 = vmatpush2.msra.mxu0 0.0
    %67 = vmatprep.subr.mxu0 0.0
    %68 = vmatpush2.msra.mxu0 0.0
    %69 = vmatprep.subr.mxu0 0.0
    %70 = vmatpush2.msra.mxu0 0.0
    %71 = vmatprep.subr.mxu0 0.0
    %72 = vmatpush2.msra.mxu0 0.0
    %73 = vmatprep.subr.mxu0 0.0
    %74 = vmatpush2.msra.mxu0 0.0
    %75 = vmatprep.subr.mxu0 0.0
    %76 = vmatpush2.msra.mxu0 0.0
    %77 = vmatprep.subr.mxu0 0.0
    %78 = vmatpush2.msra.mxu0 0.0
    %79 = vmatprep.subr.mxu0 0.0
    %80 = vmatpush2.msra.mxu0 0.0
    %81 = vmatprep.subr.mxu0 0.0
    %82 = vmatpush2.msra.mxu0 0.0
    %83 = vmatprep.subr.mxu0 0.0
    %84 = vmatpush2.msra.mxu0 0.0
    %85 = vmatprep.subr.mxu0 0.0
    %86 = vmatpush2.msra.mxu0 0.0
    %87 = vmatprep.subr.mxu0 0.0
    %88 = vmatpush2.msra.mxu0 0.0
    %89 = vmatprep.subr.mxu0 0.0
    %90 = vmatpush2.msra.mxu0 0.0
    %91 = vmatprep.subr.mxu0 0.0
    %92 = vmatpush2.msra.mxu0 0.0
    %93 = vmatprep.subr.mxu0 0.0
    %94 = vmatpush2.msra.mxu0 0.0
    %95 = vmatprep.mubr.f32.mxu0 0.0
    %96 = vmatmul.mubr.f32.gmra.mxu0 %v26
    %v97 = vpop.f32.mrf.mxu0
    %v98 = vadd.f32 0.0, %v97
    %v99 = vpop.f32.mrf.mxu0
    %100 = vmatprep.mubr.f32.mxu0 0.0
    %101 = vmatmul.mubr.f32.gmra.mxu0 %v29
    %v102 = vpop.f32.mrf.mxu0
    %v103 = vadd.f32 0.0, %v102
    %v104 = vpop.f32.mrf.mxu0
    %105 = vdwg.mxu0
    %v106 = vld [vmem:[%s2] sm:$0xff]
    %v107 = vld [vmem:[%s2 + $0x8] sm:$0xff]
    %v108 = vld [vmem:[%s2 + $0x10] sm:$0xff]
    %v109 = vld [vmem:[%s2 + $0x18] sm:$0xff]
    %v110 = vld [vmem:[%s2 + $0x20] sm:$0xff]
    %v111 = vld [vmem:[%s2 + $0x28] sm:$0xff]
    %v112 = vld [vmem:[%s2 + $0x30] sm:$0xff]
    %v113 = vld [vmem:[%s2 + $0x38] sm:$0xff]
    %v114 = vld [vmem:[%s3] sm:$0x1]
    %v116 = vlaneseq
    %v117 = vshrl.u32 %v116, 7
    %v118 = vsub.s32 0, %v117
    %v119 = vrot.slane %v114, %v118
    %vm121 = vcmask 523264
    %v123 = vsel %vm121, %v98, 0
    %v126 = vsel %vm121, %v103, 0
    %128 = vmatprep.subr.mxu0 0.0
    %129 = vmatpush1.msra.mxu0 0.0
    %130 = vmatprep.subr.mxu0 0.0
    %131 = vmatpush1.msra.mxu0 0.0
    %132 = vmatprep.subr.mxu0 0.0
    %133 = vmatpush1.msra.mxu0 0.0
    %134 = vmatprep.subr.mxu0 0.0
    %135 = vmatpush1.msra.mxu0 0.0
    %136 = vmatprep.subr.mxu0 0.0
    %137 = vmatpush1.msra.mxu0 0.0
    %138 = vmatprep.subr.mxu0 0.0
    %139 = vmatpush1.msra.mxu0 0.0
    %140 = vmatprep.subr.mxu0 0.0
    %141 = vmatpush1.msra.mxu0 0.0
    %142 = vmatprep.subr.mxu0 0.0
    %143 = vmatpush1.msra.mxu0 0.0
    %144 = vmatprep.subr.mxu0 0.0
    %145 = vmatpush1.msra.mxu0 %v113
    %146 = vmatprep.subr.mxu0 0.0
    %147 = vmatpush1.msra.mxu0 %v112
    %148 = vmatprep.subr.mxu0 0.0
    %149 = vmatpush1.msra.mxu0 %v111
    %150 = vmatprep.subr.mxu0 0.0
    %151 = vmatpush1.msra.mxu0 %v110
    %152 = vmatprep.subr.mxu0 0.0
    %153 = vmatpush1.msra.mxu0 %v109
    %154 = vmatprep.subr.mxu0 0.0
    %155 = vmatpush1.msra.mxu0 %v108
    %156 = vmatprep.subr.mxu0 0.0
    %157 = vmatpush1.msra.mxu0 %v107
    %158 = vmatprep.subr.mxu0 0.0
    %159 = vmatpush1.msra.mxu0 %v106
    %160 = vmatprep.subr.mxu0 0.0
    %161 = vmatpush2.msra.mxu0 0.0
    %162 = vmatprep.subr.mxu0 0.0
    %163 = vmatpush2.msra.mxu0 0.0
    %164 = vmatprep.subr.mxu0 0.0
    %165 = vmatpush2.msra.mxu0 0.0
    %166 = vmatprep.subr.mxu0 0.0
    %167 = vmatpush2.msra.mxu0 0.0
    %168 = vmatprep.subr.mxu0 0.0
    %169 = vmatpush2.msra.mxu0 0.0
    %170 = vmatprep.subr.mxu0 0.0
    %171 = vmatpush2.msra.mxu0 0.0
    %172 = vmatprep.subr.mxu0 0.0
    %173 = vmatpush2.msra.mxu0 0.0
    %174 = vmatprep.subr.mxu0 0.0
    %175 = vmatpush2.msra.mxu0 0.0
    %176 = vmatprep.subr.mxu0 0.0
    %177 = vmatpush2.msra.mxu0 0.0
    %178 = vmatprep.subr.mxu0 0.0
    %179 = vmatpush2.msra.mxu0 0.0
    %180 = vmatprep.subr.mxu0 0.0
    %181 = vmatpush2.msra.mxu0 0.0
    %182 = vmatprep.subr.mxu0 0.0
    %183 = vmatpush2.msra.mxu0 0.0
    %184 = vmatprep.subr.mxu0 0.0
    %185 = vmatpush2.msra.mxu0 0.0
    %186 = vmatprep.subr.mxu0 0.0
    %187 = vmatpush2.msra.mxu0 0.0
    %188 = vmatprep.subr.mxu0 0.0
    %189 = vmatpush2.msra.mxu0 0.0
    %190 = vmatprep.subr.mxu0 0.0
    %191 = vmatpush2.msra.mxu0 0.0
    %192 = vmatprep.mubr.f32.mxu0 0.0
    %193 = vmatmul.mubr.f32.gmra.mxu0 %v123
    %v194 = vpop.f32.mrf.mxu0
    %v195 = vadd.f32 %v119, %v194
    %v196 = vpop.f32.mrf.mxu0
    %197 = vmatprep.mubr.f32.mxu0 0.0
    %198 = vmatmul.mubr.f32.gmra.mxu0 %v126
    %v199 = vpop.f32.mrf.mxu0
    %v200 = vadd.f32 %v119, %v199
    %v201 = vpop.f32.mrf.mxu0
    %202 = vdwg.mxu0
    %203 = vst.msk [vmem:[#allocation2] sm:$0xff] %vm24, %v195
    %204 = vst.msk [vmem:[#allocation2 + $0x8] sm:$0xff] %vm24, %v200
    // Predicated region
    $region18: #{monarch_forward.1} parent=1 // pred_check
      _
    $region19: #{monarch_forward.1} parent=1 // pred_check_branch
      %206 = sbr.rel (0) target = $region21
    $region20: #{monarch_forward.1} parent=1 // pred_region
      %s208 = ssub.s32 256, 256
      %209 = vsyncadd [#allocation3], %s208
      %s210 = sshll.u32 [#allocation2], 4
      %s211 = int_to_ptr.vmem [resolvable:$true] %s210
      %216 = dma.vmem_to_hbm [thread:$0]  %s211, 256, %s4, [#allocation3], 128, 128, 8
    $region21: #{monarch_forward.1} parent=1 // pred_fallthru
      _
    // Predicated region
    $region22: #{monarch_forward.1} parent=1 // pred_check
      _
    $region23: #{monarch_forward.1} parent=1 // pred_check_branch
      %218 = sbr.rel (0) target = $region25
    $region24: #{monarch_forward.1} parent=1 // pred_region
      %219 = dma.done [#allocation3], 256
    $region25: #{monarch_forward.1} parent=1 // pred_fallthru
      _
    %220 = vsyncpa [#allocation3], 1

</llo_original>
